<compile_context>
chip_gen: v7x
topology: tpu7x:2x2x1
jax: 0.10.0
libtpu: 0.0.40
codegen_flags: <defaults>
</compile_context>

<pallas_src>
import jax
import jax.numpy as jnp
from jax.experimental import pallas as pl
from jax.experimental.pallas import tpu as pltpu


_LANES = 128                    # vreg lane width: last dim of every block
_SUBLANE_ROUND = 32             # covers f32 (8,128) / bf16 (16,128) / int8+fp8 (32,128)
_TARGET_BLOCK_BYTES = 4 << 20   # ~4 MiB per block -> in+out, double-buffered = 16 MiB VMEM
_MIN_GRID_STEPS = 4             # keep >=4 steps so v7x's two TensorCores both drive HBM
_VMEM_LIMIT_BYTES = 32 << 20    # raises v5e's 16 MiB scoped default; safe on v6e/v7x


def _copy_kernel(x_ref, o_ref):
    # Pure passthrough: PositionalEncoder.forward returns x unchanged.
    o_ref[...] = x_ref[...]


def _dma_copy_kernel(x_hbm, o_hbm, sem):
    # Single HBM->HBM DMA: minimal 2n-byte identity, zero VMEM pressure,
    # no lane/pad constraints.  Used when the flat size is not a multiple
    # of 128 lanes.
    copy = pltpu.make_async_copy(x_hbm, o_hbm, sem)
    copy.start()
    copy.wait()


def _ceil_div(a, b):
    return -(-a // b)


def _round_up(a, b):
    return _ceil_div(a, b) * b


def _choose_block_rows(rows, itemsize):
    """Rows per block: ~4 MiB, multiple of 32 sublanes, >= _MIN_GRID_STEPS steps."""
    bmax = max(
        _SUBLANE_ROUND,
        (_TARGET_BLOCK_BYTES // (_LANES * itemsize)) // _SUBLANE_ROUND * _SUBLANE_ROUND,
    )
    by_steps = _round_up(_ceil_div(rows, _MIN_GRID_STEPS), _SUBLANE_ROUND)
    block_rows = min(bmax, by_steps)
    if block_rows >= rows:
        # Tiny input: single block equal to the full array dims (always legal,
        # even when rows is not a multiple of 8).
        return rows
    return block_rows


def _identity_pallas_impl(x):
    """Identity forward through a Pallas kernel, any shape / rank / dtype."""
    orig_shape = x.shape
    n = x.size
    if n == 0 or x.ndim == 0:
        return x

    itemsize = jnp.dtype(x.dtype).itemsize

    if n % _LANES == 0:
        # Lane-aligned fast path: stream (block_rows, 128) tiles over a
        # parallel grid.  No pad, no epilogue slice; a ragged final block
        # (rows % block_rows != 0) is masked by Pallas.
        rows = n // _LANES
        block_rows = _choose_block_rows(rows, itemsize)
        x2 = x.reshape(rows, _LANES)  # free metadata reshape (contiguous)
        out2 = pl.pallas_call(
            _copy_kernel,
            out_shape=jax.ShapeDtypeStruct((rows, _LANES), x.dtype),
            grid_spec=pl.GridSpec(
                grid=(pl.cdiv(rows, block_rows),),
                in_specs=[pl.BlockSpec((block_rows, _LANES), lambda i: (i, 0))],
                out_specs=pl.BlockSpec((block_rows, _LANES), lambda i: (i, 0)),
            ),
            compiler_params=pltpu.CompilerParams(
                dimension_semantics=("parallel",),
                vmem_limit_bytes=_VMEM_LIMIT_BYTES,
            ),
        )(x2)
        return out2.reshape(orig_shape)

    # General path (size not a multiple of 128): one HBM->HBM DMA over the
    # flat buffer.  Exactly 2n bytes of HBM traffic, no VMEM staging.
    xf = x.reshape(-1)
    outf = pl.pallas_call(
        _dma_copy_kernel,
        out_shape=jax.ShapeDtypeStruct(xf.shape, xf.dtype),
        in_specs=[pl.BlockSpec(memory_space=pl.ANY)],
        out_specs=pl.BlockSpec(memory_space=pl.ANY),
        scratch_shapes=[pltpu.SemaphoreType.DMA(())],
    )(xf)
    return outf.reshape(orig_shape)


_identity_pallas = jax.jit(_identity_pallas_impl)


class PositionalEncoderClosure:
    """JAX mirror of the PyTorch PositionalEncoderClosure (base class = identity).

    Mirrors the PyTorch contract exactly: adapt_keys / adapt_queries /
    adapt_attention_before_softmax build arange index vectors from
    start_index when explicit indices are not given, then pass the tensor
    through unchanged.
    """

    def __init__(self, encoder):
        self.encoder = encoder

    def adapt_model_input(self, x, start_index=None, indices=None):
        return x

    def adapt_keys(self, k, start_index=None, indices=None):
        if indices is None:
            T = k.shape[-2]
            indices = jnp.arange(start_index, T + start_index)
        return self._adapt_keys_for_indices(k, indices)

    def _adapt_keys_for_indices(self, k, indices):
        return k

    def adapt_queries(self, q, start_index=None, indices=None):
        if indices is None:
            T = q.shape[-2]
            indices = jnp.arange(start_index, T + start_index)
        return self._adapt_queries_for_indices(q, indices)

    def _adapt_queries_for_indices(self, q, indices):
        return q

    def adapt_attention_before_softmax(self, att, start_query_index=None,
                                       start_key_index=None, q_indices=None,
                                       k_indices=None):
        if q_indices is None:
            qT = att.shape[-2]
            q_indices = jnp.arange(start_query_index, qT + start_query_index)
        if k_indices is None:
            kT = att.shape[-1]
            k_indices = jnp.arange(start_key_index, kT + start_key_index)
        return self._adapt_attention_before_softmax_for_indices(
            att, q_indices, k_indices)

    def _adapt_attention_before_softmax_for_indices(self, att, query_indices,
                                                    key_indices):
        return att


class PositionalEncoder:
    """JAX/Pallas mirror of the PyTorch PositionalEncoder module.

    The base encoder holds no parameters (config only).  The forward returns
    (x, closure).  Production default is use_pallas_copy=False (return x
    untouched — zero HBM traffic beats any copy kernel); set
    use_pallas_copy=True to route x through the Pallas identity kernel for
    testing / benchmarking.
    """
    closure_model = PositionalEncoderClosure

    def __init__(self, config=None, use_pallas_copy=False):
        self.config = config or {}
        self.use_pallas_copy = use_pallas_copy

    def __call__(self, x):
        y = _identity_pallas(x) if self.use_pallas_copy else x
        return y, self.closure_model(self)


if __name__ == "__main__":
    key = jax.random.PRNGKey(0)
    B, T, C = 2, 8, 32  # batch, sequence, hidden
    x = jax.random.normal(key, (B, T, C), dtype=jnp.float32)

    # Exercise the Pallas kernel path explicitly.
    encoder = PositionalEncoder(config={"n_embd": C, "block_size": T},
                                use_pallas_copy=True)
    y, closure = encoder(x)
    y = jax.block_until_ready(y)

    # Correctness: forward is an exact identity on x (shape, dtype, values).
    assert y.shape == x.shape and y.dtype == x.dtype
    assert bool(jnp.all(y == x))

    # Exercise the closure passthroughs for completeness.
    k = closure.adapt_keys(y, start_index=0)
    q = closure.adapt_queries(y, start_index=0)
    att = jnp.einsum("btc,bsc->bts", q, k)
    att = closure.adapt_attention_before_softmax(att, start_query_index=0,
                                                 start_key_index=0)
    jax.block_until_ready(att)
    assert bool(jnp.all(k == y)) and bool(jnp.all(q == y))

    # Multi-step tiled path: bf16, lane-aligned, grid > 1 (byte-sized blocks).
    xb = jax.random.normal(jax.random.PRNGKey(1), (4, 128, 256)).astype(jnp.bfloat16)
    yb = jax.block_until_ready(_identity_pallas(xb))
    assert yb.shape == xb.shape and yb.dtype == xb.dtype
    assert bool(jnp.all(yb == xb))

    # Unaligned 1-D path: single HBM->HBM DMA fallback (no pad, no slice).
    x1d = jax.random.normal(jax.random.PRNGKey(2), (37,), dtype=jnp.float32)
    y1d = jax.block_until_ready(_identity_pallas(x1d))
    assert y1d.shape == x1d.shape and bool(jnp.all(y1d == x1d))

    print("KERNEL_OK")
</pallas_src>

<mosaic_0001>
module attributes {stable_mosaic.version = 11 : i64} {
  func.func @_copy_kernel(%arg0: i32, %arg1: memref<4x128xf32, #tpu.memory_space<vmem>>, %arg2: memref<4x128xf32, #tpu.memory_space<vmem>>) attributes {dimension_semantics = [#tpu.dimension_semantics<parallel>], iteration_bounds = array<i64: 1>, scalar_prefetch = 0 : i64, scratch_operands = 0 : i64, tpu.core_type = #tpu.core_type<tc>, window_params = [{transform_indices = @transform_0, window_bounds = array<i64: 4, 128>}, {transform_indices = @transform_1, window_bounds = array<i64: 4, 128>}]} {
    %c0 = arith.constant 0 : index
    %c0_0 = arith.constant 0 : index
    %0 = vector.load %arg1[%c0, %c0_0] : memref<4x128xf32, #tpu.memory_space<vmem>>, vector<4x128xf32>
    %c0_1 = arith.constant 0 : index
    %c0_2 = arith.constant 0 : index
    %1 = vector.load %arg2[%c0_1, %c0_2] : memref<4x128xf32, #tpu.memory_space<vmem>>, vector<4x128xf32>
    tpu.vector_store %arg2[%c0_1, %c0_2], %0 {strides = array<i32>} : memref<4x128xf32, #tpu.memory_space<vmem>>, vector<4x128xf32>,
    return
  }
  func.func @transform_0(%arg0: i32) -> (i32, i32) {
    %c0_i32 = arith.constant 0 : i32
    %c0_i32_0 = arith.constant 0 : i32
    return %arg0, %c0_i32 : i32, i32
  }
  func.func @transform_1(%arg0: i32) -> (i32, i32) {
    %c0_i32 = arith.constant 0 : i32
    %c0_i32_0 = arith.constant 0 : i32
    return %arg0, %c0_i32 : i32, i32
  }
}

</mosaic_0001>

<llo_original>
// kernel: _identity_pallas_impl.1
$region0: #{_identity_pallas_impl.1}
  #allocation0 [shape = 'u32[]', space=smem, size = 0x4, offset = 0x4, fixed_abs, tag = 'smem constant byte address 0x4 - core index']
  #allocation1 [shape = 'u32[144,128]{1,0:T(1,128)}', space=vmem, size = 0x12000, scoped, tag = 'internal scratch']
  %s0 = inlined_call_operand.vmem [shape: f32[4,128], index: 0, kind: input, shape index: {}]
  %s1 = inlined_call_operand.vmem [shape: f32[4,128], index: 1, kind: output, shape index: {}]
  %s2 = sld [smem:[#allocation0]]
  $region14: #{_identity_pallas_impl.1} parent=0
    _
  %s4 = ssub.s32 1, %s2
  %s5 = scalar_select 0, %s4, %s2
  // Predicated region
  $region2: #{_identity_pallas_impl.1} parent=0 // pred_check
    _
  $region3: #{_identity_pallas_impl.1} parent=0 // pred_check_branch
    %7 = sbr.rel (0) target = $region5
  $region4: #{_identity_pallas_impl.1} parent=0 // pred_region
    _
  $region5: #{_identity_pallas_impl.1} parent=0 // pred_fallthru
    _
  %v8 = vld [vmem:[%s0] sm:$0xf]
  %9 = vst [vmem:[%s1] sm:$0xf] %v8
  // Predicated region
  $region6: #{_identity_pallas_impl.1} parent=0 // pred_check
    _
  $region7: #{_identity_pallas_impl.1} parent=0 // pred_check_branch
    %11 = sbr.rel (0) target = $region9
  $region8: #{_identity_pallas_impl.1} parent=0 // pred_region
    _
  $region9: #{_identity_pallas_impl.1} parent=0 // pred_fallthru
    _
  // Predicated region
  $region10: #{_identity_pallas_impl.1} parent=0 // pred_check
    _
  $region11: #{_identity_pallas_impl.1} parent=0 // pred_check_branch
    %13 = sbr.rel (0) target = $region13
  $region12: #{_identity_pallas_impl.1} parent=0 // pred_region
    _
  $region13: #{_identity_pallas_impl.1} parent=0 // pred_fallthru
    _

</llo_original>
